<compile_context>
chip_gen: v7x
topology: tpu7x:2x2x1
jax: 0.10.0
libtpu: 0.0.40
codegen_flags: <defaults>
</compile_context>

<pallas_src>
import functools

import jax
import jax.numpy as jnp
from jax import lax
from jax.experimental import pallas as pl
from jax.experimental.pallas import tpu as pltpu


# --------------------------------------------------------------------------
# Shared conv + sigmoid helper (operand is tiny: (Nb, C, 1))
# --------------------------------------------------------------------------
def _conv_sigmoid(pooled, w_ref, k_size, channels):
    """k-tap 1-D cross-correlation along the channel (sublane) axis + sigmoid.

    pooled: (Nb, C, 1) f32. Zero padding via static shifts + boundary masks.
    """
    pad = (k_size - 1) // 2
    chan_axis = pooled.ndim - 2
    # Hoist the k scalar weight reads (SMEM sld + splat) out of the tap loop.
    w = [w_ref[j] for j in range(k_size)]

    c_idx = lax.broadcasted_iota(jnp.int32, pooled.shape, chan_axis)
    zero = jnp.zeros_like(pooled)
    acc = zero
    for j in range(k_size):  # k is small & static
        off = j - pad
        if off == 0:
            tap = pooled
        else:
            shifted = jnp.roll(pooled, -off, axis=chan_axis)
            valid = (c_idx + off >= 0) & (c_idx + off < channels)
            tap = jnp.where(valid, shifted, zero)
        acc = acc + w[j] * tap
    return jax.nn.sigmoid(acc)


# --------------------------------------------------------------------------
# Fused single-pass kernel: pool + conv + sigmoid + scale in one block
# --------------------------------------------------------------------------
def eca_fused_kernel(x_ref, w_ref, o_ref, *, k_size, channels, inv_hw):
    """x_ref/o_ref: (Nb, C, HW) VMEM blocks; w_ref: (k,) conv weight in SMEM."""
    # Global average pool over the spatial (lane) axis with f32 accumulation.
    # NOTE: no bound full-block f32 copy of x is kept around for reuse.
    pooled = jnp.sum(x_ref[...].astype(jnp.float32), axis=-1, keepdims=True) * inv_hw

    y = _conv_sigmoid(pooled, w_ref, k_size, channels)       # (Nb, C, 1) f32

    # Channel-wise re-weighting straight from the native-dtype ref,
    # broadcast along the lane (spatial) axis.
    o_ref[...] = (x_ref[...] * y.astype(o_ref.dtype)).astype(o_ref.dtype)


# --------------------------------------------------------------------------
# Two-pass fallback kernels (oversized (C, HW) slabs)
# --------------------------------------------------------------------------
def eca_pool_kernel(x_ref, w_ref, y_ref, *, k_size, channels, inv_hw,
                    hw_total, hw_tile):
    """Pass 1: accumulate per-channel sums over HW tiles, then conv+sigmoid.

    x_ref: (1, C, hw_tile); y_ref: (1, C, 1) f32 output, resident across the
    HW ('arbitrary') grid axis and used as the accumulator.
    """
    hw_idx = pl.program_id(1)

    @pl.when(hw_idx == 0)
    def _():
        y_ref[...] = jnp.zeros_like(y_ref)

    x = x_ref[...].astype(jnp.float32)                       # (1, C, hw_tile)
    if hw_total % hw_tile != 0:
        # Mask out-of-bounds lanes of the final (partial) HW tile.
        pos = hw_idx * hw_tile + lax.broadcasted_iota(jnp.int32, x.shape, 2)
        x = jnp.where(pos < hw_total, x, 0.0)
    y_ref[...] += jnp.sum(x, axis=-1, keepdims=True)

    @pl.when(hw_idx == pl.num_programs(1) - 1)
    def _():
        pooled = y_ref[...] * inv_hw
        y_ref[...] = _conv_sigmoid(pooled, w_ref, k_size, channels)


def eca_scale_kernel(x_ref, y_ref, o_ref):
    """Pass 2: out = x * y, broadcast along the lane (spatial) axis."""
    o_ref[...] = (x_ref[...] * y_ref[...].astype(o_ref.dtype)).astype(o_ref.dtype)


# --------------------------------------------------------------------------
# Tiling helpers
# --------------------------------------------------------------------------
def _ceil_div(a, b):
    return -(-a // b)


def _vmem_capacity_bytes():
    """Physical VMEM capacity; conservative (v7x) fallback if query fails."""
    try:
        info = pltpu.get_tpu_info()
        cap = getattr(info, "vmem_capacity_bytes", None)
        if cap:
            return int(cap)
    except Exception:
        pass
    return 64 * 1024 * 1024


def _pick_batch_tile(n, bytes_per_sample, budget_bytes, min_steps):
    """Largest divisor of n under the VMEM budget that keeps >= min_steps grid
    steps (megacore sharding on v7x + DMA/compute overlap)."""
    best = 1
    for cand in range(1, n + 1):
        if (n % cand == 0
                and cand * bytes_per_sample <= budget_bytes
                and n // cand >= min_steps):
            best = cand
    return best


def _pick_hw_tile(hw, c, itemsize, budget_bytes):
    """Lane-dense (multiple-of-128) HW tile for the two-pass fallback."""
    if hw <= 128:
        return hw
    by_budget = max(128, (budget_bytes // max(1, c * itemsize)) // 128 * 128)
    return int(min(by_budget, (hw // 128) * 128))


# --------------------------------------------------------------------------
# Wrappers
# --------------------------------------------------------------------------
def _eca_fused(x_flat, w_flat, k_size, budget_bytes, vmem_ceiling):
    N, C, HW = x_flat.shape
    itemsize = jnp.dtype(x_flat.dtype).itemsize
    per_sample = C * HW * itemsize

    min_steps = min(N, 4)                       # keep >= 2 (ideally 4) steps
    nb = _pick_batch_tile(N, per_sample, budget_bytes, min_steps)
    block_bytes = nb * per_sample

    kernel = functools.partial(
        eca_fused_kernel, k_size=k_size, channels=C, inv_hw=1.0 / HW)

    cost = pl.CostEstimate(
        flops=2 * N * C * HW + 2 * k_size * N * C,
        transcendentals=N * C,
        bytes_accessed=2 * N * C * HW * itemsize + k_size * 4,
    )

    return pl.pallas_call(
        kernel,
        out_shape=jax.ShapeDtypeStruct((N, C, HW), x_flat.dtype),
        grid=(N // nb,),
        in_specs=[
            pl.BlockSpec((nb, C, HW), lambda b: (b, 0, 0)),
            pl.BlockSpec(memory_space=pltpu.MemorySpace.SMEM),  # (k,) weight
        ],
        out_specs=pl.BlockSpec((nb, C, HW), lambda b: (b, 0, 0)),
        compiler_params=pltpu.CompilerParams(
            dimension_semantics=("parallel",),
            # ~2x in + 2x out (double buffered) + temps; clamped to physical.
            vmem_limit_bytes=min(vmem_ceiling,
                                 max(32 * 1024 * 1024, 5 * block_bytes)),
        ),
        cost_estimate=cost,
    )(x_flat, w_flat)


def _eca_two_pass(x_flat, w_flat, k_size, budget_bytes, vmem_ceiling):
    N, C, HW = x_flat.shape
    itemsize = jnp.dtype(x_flat.dtype).itemsize
    hw_tile = _pick_hw_tile(HW, C, itemsize, budget_bytes)
    num_hw = _ceil_div(HW, hw_tile)
    block_bytes = C * hw_tile * itemsize

    # Pass 1: pool (accumulated across HW tiles) + conv + sigmoid -> (N, C, 1)
    pool_kernel = functools.partial(
        eca_pool_kernel, k_size=k_size, channels=C, inv_hw=1.0 / HW,
        hw_total=HW, hw_tile=hw_tile)

    y = pl.pallas_call(
        pool_kernel,
        out_shape=jax.ShapeDtypeStruct((N, C, 1), jnp.float32),
        grid=(N, num_hw),
        in_specs=[
            pl.BlockSpec((1, C, hw_tile), lambda b, h: (b, 0, h)),
            pl.BlockSpec(memory_space=pltpu.MemorySpace.SMEM),
        ],
        out_specs=pl.BlockSpec((1, C, 1), lambda b, h: (b, 0, 0)),
        compiler_params=pltpu.CompilerParams(
            dimension_semantics=("parallel", "arbitrary"),
            vmem_limit_bytes=min(vmem_ceiling,
                                 max(32 * 1024 * 1024, 4 * block_bytes)),
        ),
    )(x_flat, w_flat)

    # Pass 2: elementwise scale, all-'parallel', lane-dense HW tiles.
    out = pl.pallas_call(
        eca_scale_kernel,
        out_shape=jax.ShapeDtypeStruct((N, C, HW), x_flat.dtype),
        grid=(N, num_hw),
        in_specs=[
            pl.BlockSpec((1, C, hw_tile), lambda b, h: (b, 0, h)),
            pl.BlockSpec((1, C, 1), lambda b, h: (b, 0, 0)),
        ],
        out_specs=pl.BlockSpec((1, C, hw_tile), lambda b, h: (b, 0, h)),
        compiler_params=pltpu.CompilerParams(
            dimension_semantics=("parallel", "parallel"),
            vmem_limit_bytes=min(vmem_ceiling,
                                 max(32 * 1024 * 1024, 6 * block_bytes)),
        ),
    )(x_flat, y)
    return out


def eca_forward(x, weight, k_size=3, block_budget_bytes=None):
    """x: (N, C, H, W), weight: (1, 1, k) Conv1d weight (bias-free)."""
    N, C, H, W = x.shape
    HW = H * W
    x_flat = x.reshape(N, C, HW)            # free: NCHW is already (N, C, H*W)
    w_flat = weight.reshape(-1).astype(jnp.float32)   # (k,) f32 taps

    itemsize = jnp.dtype(x.dtype).itemsize
    per_sample = C * HW * itemsize

    vmem_cap = _vmem_capacity_bytes()
    vmem_ceiling = int(vmem_cap * 0.8)      # keep double-buffering headroom
    if block_budget_bytes is None:
        # ~16 MiB on 128 MiB parts (v5e/v6e), ~8.5 MiB on 64 MiB parts (v7x).
        block_budget_bytes = min(16 * 1024 * 1024, max(1, vmem_ceiling // 6))

    if per_sample <= block_budget_bytes:
        out_flat = _eca_fused(x_flat, w_flat, k_size,
                              block_budget_bytes, vmem_ceiling)
    else:
        out_flat = _eca_two_pass(x_flat, w_flat, k_size,
                                 block_budget_bytes, vmem_ceiling)
    return out_flat.reshape(N, C, H, W)


# --------------------------------------------------------------------------
# Pure-JAX reference mirroring the PyTorch forward
# --------------------------------------------------------------------------
def eca_reference(x, weight, k_size=3):
    N, C, H, W = x.shape
    pooled = x.mean(axis=(2, 3))                            # (N, C)
    pad = (k_size - 1) // 2
    padded = jnp.pad(pooled, ((0, 0), (pad, pad)))
    w = weight.reshape(-1)
    y = sum(w[j] * padded[:, j:j + C] for j in range(k_size))
    y = jax.nn.sigmoid(y)
    return x * y[:, :, None, None]


if __name__ == "__main__":
    k_size = 3
    N, C, H, W = 2, 4, 16, 16

    key = jax.random.PRNGKey(0)
    kx, kw = jax.random.split(key)
    x = jax.random.normal(kx, (N, C, H, W), dtype=jnp.float32)

    # Deterministic Conv1d(1, 1, k_size, bias=False) weight init
    # (uniform(-b, b) with b = 1/sqrt(fan_in), matching PyTorch's default).
    bound = 1.0 / jnp.sqrt(jnp.float32(k_size))
    weight = jax.random.uniform(
        kw, (1, 1, k_size), dtype=jnp.float32, minval=-bound, maxval=bound
    )

    ref = eca_reference(x, weight, k_size=k_size)

    # Fused single-pass path (normal sizes).
    out = jax.block_until_ready(eca_forward(x, weight, k_size=k_size))
    assert out.shape == x.shape and out.dtype == x.dtype
    assert jnp.allclose(out, ref, atol=1e-5, rtol=1e-5)

    # Two-pass fallback path (forced with a tiny block budget) — exercises the
    # HW-tiled pool+conv+sigmoid accumulator pass and the elementwise-scale
    # pass used for oversized (C, H*W) slabs.
    out2 = jax.block_until_ready(
        eca_forward(x, weight, k_size=k_size, block_budget_bytes=2048))
    assert out2.shape == x.shape and out2.dtype == x.dtype
    assert jnp.allclose(out2, ref, atol=1e-5, rtol=1e-5)

    print("KERNEL_OK")
</pallas_src>

<mosaic_0001>
module attributes {stable_mosaic.version = 11 : i64} {
  func.func @eca_fused_kernel(%arg0: i32, %arg1: memref<1x4x256xf32, #tpu.memory_space<vmem>>, %arg2: memref<3xf32, #tpu.memory_space<smem>>, %arg3: memref<1x4x256xf32, #tpu.memory_space<vmem>>) attributes {dimension_semantics = [#tpu.dimension_semantics<parallel>], iteration_bounds = array<i64: 2>, scalar_prefetch = 0 : i64, scratch_operands = 0 : i64, tpu.core_type = #tpu.core_type<tc>, window_params = [{transform_indices = @transform_0, window_bounds = array<i64: 1, 4, 256>}, {transform_indices = @transform_1, window_bounds = array<i64: 3>}, {transform_indices = @transform_2, window_bounds = array<i64: 1, 4, 256>}]} {
    %c0 = arith.constant 0 : index
    %c0_0 = arith.constant 0 : index
    %c0_1 = arith.constant 0 : index
    %0 = vector.load %arg1[%c0, %c0_0, %c0_1] : memref<1x4x256xf32, #tpu.memory_space<vmem>>, vector<1x4x256xf32>
    %cst = arith.constant dense<0.000000e+00> : vector<1x4xf32>
    %1 = vector.multi_reduction <add>, %0, %cst [2] : vector<1x4x256xf32> to vector<1x4xf32>
    %2 = vector.shape_cast %1 : vector<1x4xf32> to vector<1x4x1xf32>
    %cst_2 = arith.constant 3.906250e-03 : f32
    %3 = vector.broadcast %cst_2 : f32 to vector<1x4x1xf32>
    %4 = arith.mulf %2, %3 : vector<1x4x1xf32>
    %c0_3 = arith.constant 0 : index
    %5 = memref.load %arg2[%c0_3] : memref<3xf32, #tpu.memory_space<smem>>
    %c1 = arith.constant 1 : index
    %6 = memref.load %arg2[%c1] : memref<3xf32, #tpu.memory_space<smem>>
    %c2 = arith.constant 2 : index
    %7 = memref.load %arg2[%c2] : memref<3xf32, #tpu.memory_space<smem>>
    %8 = tpu.iota {dimensions = array<i32: 1>} : vector<1x4x1xi32>
    %cst_4 = arith.constant 0.000000e+00 : f32
    %9 = vector.broadcast %cst_4 : f32 to vector<1x4x1xf32>
    %10 = vector.extract_strided_slice %4 {offsets = [0, 3, 0], sizes = [1, 1, 1], strides = [1, 1, 1]} : vector<1x4x1xf32> to vector<1x1x1xf32>
    %11 = vector.extract_strided_slice %4 {offsets = [0, 0, 0], sizes = [1, 3, 1], strides = [1, 1, 1]} : vector<1x4x1xf32> to vector<1x3x1xf32>
    %12 = tpu.concatenate %10, %11 in 1 : vector<1x1x1xf32>, vector<1x3x1xf32> -> vector<1x4x1xf32>
    %c-1_i32 = arith.constant -1 : i32
    %13 = vector.broadcast %c-1_i32 : i32 to vector<1x4x1xi32>
    %14 = arith.addi %8, %13 : vector<1x4x1xi32>
    %c0_i32 = arith.constant 0 : i32
    %15 = vector.broadcast %c0_i32 : i32 to vector<1x4x1xi32>
    %16 = arith.cmpi sge, %14, %15 : vector<1x4x1xi32>
    %c-1_i32_5 = arith.constant -1 : i32
    %17 = vector.broadcast %c-1_i32_5 : i32 to vector<1x4x1xi32>
    %18 = arith.addi %8, %17 : vector<1x4x1xi32>
    %c4_i32 = arith.constant 4 : i32
    %19 = vector.broadcast %c4_i32 : i32 to vector<1x4x1xi32>
    %20 = arith.cmpi slt, %18, %19 : vector<1x4x1xi32>
    %21 = arith.andi %16, %20 : vector<1x4x1xi1>
    %22 = arith.select %21, %12, %9 : vector<1x4x1xi1>, vector<1x4x1xf32>
    %23 = vector.broadcast %5 : f32 to vector<1x4x1xf32>
    %24 = arith.mulf %23, %22 : vector<1x4x1xf32>
    %25 = arith.addf %9, %24 : vector<1x4x1xf32>
    %26 = vector.broadcast %6 : f32 to vector<1x4x1xf32>
    %27 = arith.mulf %26, %4 : vector<1x4x1xf32>
    %28 = arith.addf %25, %27 : vector<1x4x1xf32>
    %29 = vector.extract_strided_slice %4 {offsets = [0, 1, 0], sizes = [1, 3, 1], strides = [1, 1, 1]} : vector<1x4x1xf32> to vector<1x3x1xf32>
    %30 = vector.extract_strided_slice %4 {offsets = [0, 0, 0], sizes = [1, 1, 1], strides = [1, 1, 1]} : vector<1x4x1xf32> to vector<1x1x1xf32>
    %31 = tpu.concatenate %29, %30 in 1 : vector<1x3x1xf32>, vector<1x1x1xf32> -> vector<1x4x1xf32>
    %c1_i32 = arith.constant 1 : i32
    %32 = vector.broadcast %c1_i32 : i32 to vector<1x4x1xi32>
    %33 = arith.addi %8, %32 : vector<1x4x1xi32>
    %c0_i32_6 = arith.constant 0 : i32
    %34 = vector.broadcast %c0_i32_6 : i32 to vector<1x4x1xi32>
    %35 = arith.cmpi sge, %33, %34 : vector<1x4x1xi32>
    %c1_i32_7 = arith.constant 1 : i32
    %36 = vector.broadcast %c1_i32_7 : i32 to vector<1x4x1xi32>
    %37 = arith.addi %8, %36 : vector<1x4x1xi32>
    %c4_i32_8 = arith.constant 4 : i32
    %38 = vector.broadcast %c4_i32_8 : i32 to vector<1x4x1xi32>
    %39 = arith.cmpi slt, %37, %38 : vector<1x4x1xi32>
    %40 = arith.andi %35, %39 : vector<1x4x1xi1>
    %41 = arith.select %40, %31, %9 : vector<1x4x1xi1>, vector<1x4x1xf32>
    %42 = vector.broadcast %7 : f32 to vector<1x4x1xf32>
    %43 = arith.mulf %42, %41 : vector<1x4x1xf32>
    %44 = arith.addf %28, %43 : vector<1x4x1xf32>
    %45 = arith.negf %44 : vector<1x4x1xf32>
    %46 = math.exp %45 : vector<1x4x1xf32>
    %cst_9 = arith.constant 1.000000e+00 : f32
    %47 = vector.broadcast %cst_9 : f32 to vector<1x4x1xf32>
    %48 = arith.addf %47, %46 : vector<1x4x1xf32>
    %49 = arith.divf %47, %48 : vector<1x4x1xf32>
    %c0_10 = arith.constant 0 : index
    %c0_11 = arith.constant 0 : index
    %c0_12 = arith.constant 0 : index
    %50 = vector.load %arg1[%c0_10, %c0_11, %c0_12] : memref<1x4x256xf32, #tpu.memory_space<vmem>>, vector<1x4x256xf32>
    %51 = vector.broadcast %49 : vector<1x4x1xf32> to vector<1x4x256xf32>
    %52 = arith.mulf %50, %51 : vector<1x4x256xf32>
    %c0_13 = arith.constant 0 : index
    %c0_14 = arith.constant 0 : index
    %c0_15 = arith.constant 0 : index
    %53 = vector.load %arg3[%c0_13, %c0_14, %c0_15] : memref<1x4x256xf32, #tpu.memory_space<vmem>>, vector<1x4x256xf32>
    tpu.vector_store %arg3[%c0_13, %c0_14, %c0_15], %52 {strides = array<i32>} : memref<1x4x256xf32, #tpu.memory_space<vmem>>, vector<1x4x256xf32>,
    return
  }
  func.func @transform_0(%arg0: i32) -> (i32, i32, i32) {
    %c0_i32 = arith.constant 0 : i32
    %c0_i32_0 = arith.constant 0 : i32
    %c0_i32_1 = arith.constant 0 : i32
    return %arg0, %c0_i32, %c0_i32_0 : i32, i32, i32
  }
  func.func @transform_1(%arg0: i32) -> i32 {
    %c0_i32 = arith.constant 0 : i32
    %c0_i32_0 = arith.constant 0 : i32
    return %c0_i32 : i32
  }
  func.func @transform_2(%arg0: i32) -> (i32, i32, i32) {
    %c0_i32 = arith.constant 0 : i32
    %c0_i32_0 = arith.constant 0 : i32
    %c0_i32_1 = arith.constant 0 : i32
    return %arg0, %c0_i32, %c0_i32_0 : i32, i32, i32
  }
}

</mosaic_0001>

<llo_original>
// kernel: tpu_custom_call.1
$region0: #{tpu_custom_call.1}
  #allocation0 [shape = 'u32[]', space=smem, size = 0x4, offset = 0x4, fixed_abs, tag = 'smem constant byte address 0x4 - core index']
  #allocation1 [shape = 'u32[144,128]{1,0:T(1,128)}', space=vmem, size = 0x12000, scoped, tag = 'internal scratch']
  %s0 = inlined_call_operand.hbm [shape: f32[2,4,256], index: 0, kind: input, shape index: {}]
  %s1 = inlined_call_operand.vmem [shape: f32[3], index: 1, kind: input, shape index: {}]
  %s2 = inlined_call_operand.hbm [shape: f32[2,4,256], index: 2, kind: output, shape index: {}]
  %s3 = sld [smem:[#allocation0]]
  $region49: #{tpu_custom_call.1} parent=0
    _
  %s5 = ssub.s32 1, %s3
  %s6 = scalar_select 0, %s5, %s3
  $region1: #{tpu_custom_call.1} parent=0
    #allocation2 [shape = 'u8[8192]{0}', space=vmem, size = 0x2000, scoped, tag = 'input window, operand 0']
    #allocation3 [shape = 's32[2]{0}', space=sflag, size = 0x8, scoped, tag = 'scoped memory for tpu_custom_call.1']
    #allocation4 [shape = 's32[2]{0}', space=sflag, size = 0x8, scoped, tag = 'scoped memory for tpu_custom_call.1']
    #allocation5 [shape = 's32[2]{0}', space=sflag, size = 0x8, scoped, tag = 'scoped memory for tpu_custom_call.1']
    #allocation6 [shape = 'u8[512]{0}', space=smem, size = 0x200, scoped, tag = 'input window, operand 1, single buffered']
    #allocation7 [shape = 'u8[8192]{0}', space=vmem, size = 0x2000, scoped, tag = 'output window, operand 0']
    %7 = vsyncpa [#allocation3], 0
    %s8 = scalar_lea.sflag [#allocation3], 1
    %9 = vsyncpa %s8, 0
    %10 = vsyncpa [#allocation5], 0
    %11 = vsyncpa [#allocation4], 0
    %s12 = scalar_lea.sflag [#allocation4], 1
    %13 = vsyncpa %s12, 0
    loop: start=0, step=1, limit=4
    $region2: #{tpu_custom_call.1} parent=1 // loop_pre_header
      _
    $region3: #{tpu_custom_call.1} parent=1 // loop_header
      %s15 = sphi 0, %s19
      %p16 = scmp.ge.s32.totalorder %s15, 4
      %s25 = sphi 0, %s27
      %s28 = sphi 0, %s25
      %s29 = sphi 0, %s28
      %s45 = sphi 0, %s29
      %s49 = sphi 0, %s49
      %s51 = sphi 0, %s49
      %s52 = sphi 0, %s51
      %s66 = sphi 0, %s52
      %s72 = sphi 0, %s74
      %s75 = sphi 0, %s72
      %s76 = sphi 0, %s75
      %s92 = sphi 0, %s76
    $region4: #{tpu_custom_call.1} parent=1 // loop_header_branch
      %18 = sbr.rel (%p16) target = $region8
    $region5: #{tpu_custom_call.1} parent=1 // loop_body
      %s20 = ssub.s32 %s15, 1
      %s21 = ssub.s32 %s15, 2
      %s22 = sadd.s32 %s15, 1
      %s23 = ssub.s32 %s15, %s22
      %p24 = scmp.eq.s32.totalorder %s23, 0
      %s26 = sadd.s32 %s25, 1
      %s27 = scalar_select %p24, %s25, %s26
      %p30 = pneg %p24
      %p31 = scmp.eq.s32.totalorder %s15, 1
      %p32 = por %p30, %p31
      %p33 = scmp.ne.s32.totalorder %s25, %s28
      %p34 = scmp.eq.s32.totalorder %s15, 0
      %p35 = por %p33, %p34
      %p36 = scmp.ne.s32.totalorder %s25, %s28
      %p37 = scmp.eq.s32.totalorder %s20, 1
      %p38 = por %p36, %p37
      %p39 = scmp.ne.s32.totalorder %s28, %s29
      %p40 = scmp.eq.s32.totalorder %s20, 0
      %p41 = por %p39, %p40
      %p42 = scmp.ne.s32.totalorder %s28, %s29
      %p43 = scmp.eq.s32.totalorder %s21, 1
      %p44 = por %p42, %p43
      %p46 = scmp.ne.s32.totalorder %s29, %s45
      %p47 = scmp.eq.s32.totalorder %s21, 0
      %p48 = por %p46, %p47
      %s50 = sadd.s32 %s49, 1
      %p53 = scmp.eq.s32.totalorder %s15, 1
      %p54 = scmp.ne.s32.totalorder %s49, %s51
      %p55 = scmp.eq.s32.totalorder %s15, 0
      %p56 = por %p54, %p55
      %p57 = scmp.ne.s32.totalorder %s49, %s51
      %p58 = scmp.eq.s32.totalorder %s20, 1
      %p59 = por %p57, %p58
      %p60 = scmp.ne.s32.totalorder %s51, %s52
      %p61 = scmp.eq.s32.totalorder %s20, 0
      %p62 = por %p60, %p61
      %p63 = scmp.ne.s32.totalorder %s51, %s52
      %p64 = scmp.eq.s32.totalorder %s21, 1
      %p65 = por %p63, %p64
      %p67 = scmp.ne.s32.totalorder %s52, %s66
      %p68 = scmp.eq.s32.totalorder %s21, 0
      %p69 = por %p67, %p68
      %s70 = ssub.s32 %s15, %s22
      %p71 = scmp.eq.s32.totalorder %s70, 0
      %s73 = sadd.s32 %s72, 1
      %s74 = scalar_select %p71, %s72, %s73
      %p77 = pneg %p71
      %p78 = scmp.eq.s32.totalorder %s15, 1
      %p79 = por %p77, %p78
      %p80 = scmp.ne.s32.totalorder %s72, %s75
      %p81 = scmp.eq.s32.totalorder %s15, 0
      %p82 = por %p80, %p81
      %p83 = scmp.ne.s32.totalorder %s72, %s75
      %p84 = scmp.eq.s32.totalorder %s20, 1
      %p85 = por %p83, %p84
      %p86 = scmp.ne.s32.totalorder %s75, %s76
      %p87 = scmp.eq.s32.totalorder %s20, 0
      %p88 = por %p86, %p87
      %p89 = scmp.ne.s32.totalorder %s75, %s76
      %p90 = scmp.eq.s32.totalorder %s21, 1
      %p91 = por %p89, %p90
      %p93 = scmp.ne.s32.totalorder %s76, %s92
      %p94 = scmp.eq.s32.totalorder %s21, 0
      %p95 = por %p93, %p94
      %p96 = scmp.le.s32.totalorder 1, %s15
      %p97 = scmp.lt.s32.totalorder %s15, 3
      %p98 = pnand %p96, %p97
      %p99 = pneg %p98
      // Predicated region
      $region9: #{tpu_custom_call.1} parent=5 // pred_check
        _
      $region10: #{tpu_custom_call.1} parent=5 // pred_check_branch
        %101 = sbr.rel (%p98) target = $region12
      $region11: #{tpu_custom_call.1} parent=5 // pred_region
        %s102 = ssub.s32 %s15, 1
        // Predicated region
        $region13: #{tpu_custom_call.1} parent=11 // pred_check
          %p103 = pneg %p62
        $region14: #{tpu_custom_call.1} parent=11 // pred_check_branch
          %105 = sbr.rel (%p103) target = $region16
        $region15: #{tpu_custom_call.1} parent=11 // pred_region
          %s107 = ssub.s32 16, 16
          %108 = vsyncadd [#allocation5], %s107
          %s110 = sshll.u32 %s1, 4
          %s111 = int_to_ptr.vmem [resolvable:$true] %s110
          %113 = dma.vmem_to_smem %s111, 16, [#allocation6], [#allocation5]
        $region16: #{tpu_custom_call.1} parent=11 // pred_fallthru
          _
      $region12: #{tpu_custom_call.1} parent=5 // pred_fallthru
        _
      %p114 = scmp.lt.s32.totalorder %s15, 2
      // Predicated region
      $region17: #{tpu_custom_call.1} parent=5 // pred_check
        %p115 = pneg %p114
      $region18: #{tpu_custom_call.1} parent=5 // pred_check_branch
        %117 = sbr.rel (%p115) target = $region20
      $region19: #{tpu_custom_call.1} parent=5 // pred_region
        // Predicated region
        $region21: #{tpu_custom_call.1} parent=19 // pred_check
          %p118 = pneg %p35
        $region22: #{tpu_custom_call.1} parent=19 // pred_check_branch
          %120 = sbr.rel (%p118) target = $region24
        $region23: #{tpu_custom_call.1} parent=19 // pred_region
          %s121 = sand.u32 %s25, 1
          %s122 = scalar_lea.sflag [#allocation3], %s121
          %s123 = sand.u32 %s25, 1
          %s124 = smul.addr %s123, 8
          %s125 = scalar_lea.vmem [#allocation2], %s124
          %s127 = ssub.s32 128, 128
          %128 = vsyncadd %s122, %s127
          %s129 = smul.addr %s15, 2
          %s130 = smul.addr %s129, 64
          %s131 = scalar_lea.hbm %s0, %s130
          %s133 = sshll.u32 %s125, 4
          %s134 = int_to_ptr.vmem [resolvable:$true] %s133
          %136 = dma.hbm_to_vmem [thread:$0]  %s131, 128, %s134, %s122
        $region24: #{tpu_custom_call.1} parent=19 // pred_fallthru
          _
      $region20: #{tpu_custom_call.1} parent=5 // pred_fallthru
        _
      %p137 = scmp.le.s32.totalorder 1, %s15
      %p138 = scmp.lt.s32.totalorder %s15, 3
      %p139 = pnand %p137, %p138
      %p140 = pneg %p139
      // Predicated region
      $region25: #{tpu_custom_call.1} parent=5 // pred_check
        _
      $region26: #{tpu_custom_call.1} parent=5 // pred_check_branch
        %142 = sbr.rel (%p139) target = $region28
      $region27: #{tpu_custom_call.1} parent=5 // pred_region
        %s143 = ssub.s32 %s15, 1
        %s144 = sand.u32 %s28, 1
        %s145 = scalar_lea.sflag [#allocation3], %s144
        %s146 = sand.u32 %s28, 1
        %s147 = smul.addr %s146, 8
        %s148 = scalar_lea.vmem [#allocation2], %s147
        // Predicated region
        $region29: #{tpu_custom_call.1} parent=27 // pred_check
          %p149 = pneg %p41
        $region30: #{tpu_custom_call.1} parent=27 // pred_check_branch
          %151 = sbr.rel (%p149) target = $region32
        $region31: #{tpu_custom_call.1} parent=27 // pred_region
          %152 = dma.done %s145, 128
        $region32: #{tpu_custom_call.1} parent=27 // pred_fallthru
          _
        // Predicated region
        $region33: #{tpu_custom_call.1} parent=27 // pred_check
          %p153 = pneg %p62
        $region34: #{tpu_custom_call.1} parent=27 // pred_check_branch
          %155 = sbr.rel (%p153) target = $region36
        $region35: #{tpu_custom_call.1} parent=27 // pred_region
          %156 = dma.done [#allocation5], 16
        $region36: #{tpu_custom_call.1} parent=27 // pred_fallthru
          _
        %157 = sfence
        %s158 = sand.u32 %s28, 1
        %s159 = scalar_lea.sflag [#allocation3], %s158
        %s160 = sand.u32 %s28, 1
        %s161 = smul.addr %s160, 8
        %s162 = scalar_lea.vmem [#allocation2], %s161
        %p163 = pneg %p41
        %p164 = pneg %p38
        %p165 = pneg %p62
        %p166 = pneg %p59
        %p167 = pneg %p88
        %p168 = pneg %p85
        %s169 = sand.u32 %s75, 1
        %s170 = scalar_lea.sflag [#allocation4], %s169
        %s171 = sand.u32 %s75, 1
        %s172 = smul.addr %s171, 8
        %s173 = scalar_lea.vmem [#allocation7], %s172
        %v174 = vld [vmem:[%s148] sm:$0xff]
        %v176 = vcombine.high %v174, %v174
        %vm178 = vcmask 1043456
        %v179 = vsel %vm178, %v174, 0.0
        %v180 = vsel %vm178, %v176, 0.0
        %v181 = vadd.f32 %v179, %v180
        %182 = vadd.xlane.f32.xlu0 %v181
        %v183 = vpop.xlane.xlu0 %182
        %v184 = vmul.f32 %v183, 0.00390625
        %s185 = sld [smem:[#allocation6]]
        %s186 = sld [smem:[#allocation6 + $0x1]]
        %s187 = sld [smem:[#allocation6 + $0x2]]
        %v188 = vlaneseq
        %v189 = vshrl.u32 %v188, 7
        %v191 = vrot.slane %v184, 3
        %v193 = vrot.slane %v184, 7
        %vm195 = vcmask 1040384
        %v196 = vsel %vm195, %v191, %v193
        %v197 = vadd.s32 %v189, 4294967295
        %vm198 = vcmp.ge.s32.totalorder %v197, 0
        %vm199 = vcmp.lt.s32.totalorder %v197, 4
        %vm200 = vmand %vm198, %vm199
        %v201 = vsel %vm200, %v196, 0.0
        %v202 = vstv %s185
        %v203 = vmul.f32 %v202, %v201
        %v204 = vadd.f32 %v203, 0.0
        %v205 = vstv %s186
        %v206 = vmul.f32 %v205, %v184
        %v207 = vadd.f32 %v204, %v206
        %v208 = vrot.slane %v184, 1
        %v210 = vrot.slane %v184, 5
        %vm212 = vcmask 1042432
        %v213 = vsel %vm212, %v208, %v210
        %v214 = vadd.s32 %v189, 1
        %vm215 = vcmp.ge.s32.totalorder %v214, 0
        %vm216 = vcmp.lt.s32.totalorder %v214, 4
        %vm217 = vmand %vm215, %vm216
        %v218 = vsel %vm217, %v213, 0.0
        %v219 = vstv %s187
        %v220 = vmul.f32 %v219, %v218
        %v221 = vadd.f32 %v207, %v220
        %v222 = vxor.u32 %v221, 2147483648
        %v223 = vmul.f32 %v222, 1.442695
        %v224 = vpow.pop %v223
        %v225 = vadd.f32 %v224, 1.0
        %v226 = vrcp.pop %v225
        %v227 = vmul.f32 1.0, %v226
        %229 = vset.pattern.permute.xlu0 0
        %230 = vperm.xlu0 %229, %v227
        %v231 = vpop.permute.xlu0 %230
        %v233 = vunpack.c.l.s4 839922192
        %v234 = vunpack.c.0.s8 %v233
        %v235 = vlaneseq
        %v236 = vshrl.u32 %v235, 7
        %v237 = vsub.s32 %v234, %v236
        %v238 = vrot.slane %v231, %v237
        %v240 = vmul.f32 %v174, %v238
        %241 = vst [vmem:[%s173] sm:$0xff] %v240
        %s242 = sand.u32 %s75, 1
        %s243 = scalar_lea.sflag [#allocation4], %s242
        %s244 = sand.u32 %s75, 1
        %s245 = smul.addr %s244, 8
        %s246 = scalar_lea.vmem [#allocation7], %s245
        // Predicated region
        $region37: #{tpu_custom_call.1} parent=27 // pred_check
          %p247 = pneg %p85
        $region38: #{tpu_custom_call.1} parent=27 // pred_check_branch
          %249 = sbr.rel (%p247) target = $region40
        $region39: #{tpu_custom_call.1} parent=27 // pred_region
          %s251 = ssub.s32 128, 128
          %252 = vsyncadd %s243, %s251
          %s253 = smul.addr %s20, 2
          %s254 = smul.addr %s253, 64
          %s255 = scalar_lea.hbm %s2, %s254
          %s257 = sshll.u32 %s246, 4
          %s258 = int_to_ptr.vmem [resolvable:$true] %s257
          %260 = dma.vmem_to_hbm [thread:$0]  %s258, 128, %s255, %s243
        $region40: #{tpu_custom_call.1} parent=27 // pred_fallthru
          _
      $region28: #{tpu_custom_call.1} parent=5 // pred_fallthru
        _
      %p261 = scmp.le.s32.totalorder 2, %s15
      // Predicated region
      $region41: #{tpu_custom_call.1} parent=5 // pred_check
        %p262 = pneg %p261
      $region42: #{tpu_custom_call.1} parent=5 // pred_check_branch
        %264 = sbr.rel (%p262) target = $region44
      $region43: #{tpu_custom_call.1} parent=5 // pred_region
        %s265 = ssub.s32 %s15, 2
        // Predicated region
        $region45: #{tpu_custom_call.1} parent=43 // pred_check
          %p266 = pneg %p91
        $region46: #{tpu_custom_call.1} parent=43 // pred_check_branch
          %268 = sbr.rel (%p266) target = $region48
        $region47: #{tpu_custom_call.1} parent=43 // pred_region
          %s269 = sand.u32 %s76, 1
          %s270 = scalar_lea.sflag [#allocation4], %s269
          %s271 = sand.u32 %s76, 1
          %s272 = smul.addr %s271, 8
          %s273 = scalar_lea.vmem [#allocation7], %s272
          %274 = dma.done %s270, 128
        $region48: #{tpu_custom_call.1} parent=43 // pred_fallthru
          _
      $region44: #{tpu_custom_call.1} parent=5 // pred_fallthru
        _
    $region6: #{tpu_custom_call.1} parent=1 // loop_footer
      %s19 = sadd.s32 1, %s15
    $region7: #{tpu_custom_call.1} parent=1 // loop_footer_branch
      %14 = sbr.rel target = $region3
    $region8: #{tpu_custom_call.1} parent=1 // loop_exit
      _
    %275 = vsyncpa [#allocation3], 1
    %s276 = scalar_lea.sflag [#allocation3], 1
    %277 = vsyncpa %s276, 1
    %278 = vsyncpa [#allocation4], 1
    %s279 = scalar_lea.sflag [#allocation4], 1
    %280 = vsyncpa %s279, 1
    %281 = vsyncpa [#allocation5], 1
    %s282 = scalar_lea.sflag [#allocation5], 1
    %283 = vsyncpa %s282, 1

</llo_original>
